<compile_context>
chip_gen: v7x
topology: tpu7x:2x2x1
jax: 0.10.0
libtpu: 0.0.40
codegen_flags: <defaults>
</compile_context>

<pallas_src>
import functools

import jax
import jax.numpy as jnp
from jax import lax
from jax.experimental import pallas as pl
from jax.experimental.pallas import tpu as pltpu


def _identity_block_kernel(p_ref, w_ref, g_ref, beta_ref, avg_ref, o_ref, *, eps):
    # p_ref   : (Cin*9 + 1, L)  im2col patches, last row = ones (bias term)
    # w_ref   : (Cout, Cin*9+1) conv weights with bias folded into last column
    # g_ref   : (1, L)          LayerNorm gamma, tiled along the lane axis
    # beta_ref: (1, L)          LayerNorm beta, tiled along the lane axis
    # avg_ref : (L, L)          block-diagonal averaging matrix (1/W per W-block)
    # o_ref   : (Cout, L)       lane-dense output (repacked to NCHW outside)

    # 3x3 conv + bias as a single MXU contraction.
    acc = jnp.dot(w_ref[...], p_ref[...],
                  preferred_element_type=jnp.float32)        # (Cout, L)

    # LayerNorm over the original last axis (W): each W-wide lane segment of a
    # row is one (n, c, h) group. Segment mean/var via the fixed averaging
    # matrix keeps the reduction exact while staying lane-dense (MXU work).
    A = avg_ref[...]
    mean = jnp.dot(acc, A, preferred_element_type=jnp.float32)      # broadcasted seg mean
    xc = acc - mean
    var = jnp.dot(xc * xc, A, preferred_element_type=jnp.float32)   # broadcasted seg var (biased)

    y = xc * lax.rsqrt(var + eps) * g_ref[...] + beta_ref[...]

    # ReLU + store (unmasked, lane-dense).
    o_ref[...] = jnp.maximum(y, 0.0).astype(o_ref.dtype)


def identity_block_forward(x, conv_w, conv_b, ln_gamma, ln_beta, eps=1e-5):
    """x: (N, C, H, W) float32; conv_w: (C, C, 3, 3); conv_b: (C,);
    ln_gamma/ln_beta: (W,) where W == n_step."""
    N, C, H, W = x.shape
    assert conv_w.shape == (C, C, 3, 3)
    assert ln_gamma.shape == (W,) and ln_beta.shape == (W,)
    L = N * H * W  # 512: lane-dense (multiple of 128)

    # ---- wrapper-side layout plumbing (plain JAX / XLA) ----
    # im2col: column index = n*H*W + h*W + w ; row index = cin*9 + (kh*3 + kw).
    x_pad = jnp.pad(x, ((0, 0), (0, 0), (1, 1), (1, 1)))               # (N, C, H+2, W+2)
    taps = jnp.stack([x_pad[:, :, kh:kh + H, kw:kw + W]
                      for kh in range(3) for kw in range(3)], axis=2)  # (N, C, 9, H, W)
    patches = taps.transpose(1, 2, 0, 3, 4).reshape(C * 9, L)          # (Cin*9, L)
    patches = jnp.concatenate(
        [patches, jnp.ones((1, L), patches.dtype)], axis=0)            # (+ bias row)

    # conv weights packed 2D, bias folded as last column: (Cout, Cin*9 + 1).
    w2d = jnp.concatenate(
        [conv_w.reshape(C, C * 9), conv_b[:, None]], axis=1).astype(jnp.float32)

    # LayerNorm params tiled to match the lane-packed columns (index w = col % W).
    g_tiled = jnp.tile(ln_gamma, N * H)[None, :].astype(jnp.float32)   # (1, L)
    b_tiled = jnp.tile(ln_beta, N * H)[None, :].astype(jnp.float32)    # (1, L)

    # Block-diagonal averaging matrix: A[i, j] = 1/W if i//W == j//W else 0.
    seg = jnp.arange(L) // W
    avg = (seg[:, None] == seg[None, :]).astype(jnp.float32) / W       # (L, L)

    kernel = functools.partial(_identity_block_kernel, eps=eps)

    out2d = pl.pallas_call(
        kernel,
        out_shape=jax.ShapeDtypeStruct((C, L), x.dtype),
        grid=(1,),  # whole problem in one step; per-step work is tiny
        in_specs=[
            pl.BlockSpec((C * 9 + 1, L), lambda i: (0, 0)),
            pl.BlockSpec((C, C * 9 + 1), lambda i: (0, 0)),
            pl.BlockSpec((1, L), lambda i: (0, 0)),
            pl.BlockSpec((1, L), lambda i: (0, 0)),
            pl.BlockSpec((L, L), lambda i: (0, 0)),
        ],
        out_specs=pl.BlockSpec((C, L), lambda i: (0, 0)),
        compiler_params=pltpu.CompilerParams(
            dimension_semantics=("arbitrary",)),
    )(patches, w2d, g_tiled, b_tiled, avg)

    # Repack lane-dense (C, N*H*W) back to NCHW.
    return out2d.reshape(C, N, H, W).transpose(1, 0, 2, 3)


def _reference(x, conv_w, conv_b, ln_gamma, ln_beta, eps=1e-5):
    out = lax.conv_general_dilated(
        x, conv_w, window_strides=(1, 1), padding=((1, 1), (1, 1)),
        dimension_numbers=("NCHW", "OIHW", "NCHW"))
    out = out + conv_b[None, :, None, None]
    mean = out.mean(-1, keepdims=True)
    var = ((out - mean) ** 2).mean(-1, keepdims=True)
    out = (out - mean) * lax.rsqrt(var + eps)
    out = out * ln_gamma[None, None, None, :] + ln_beta[None, None, None, :]
    return jnp.maximum(out, 0.0)


if __name__ == "__main__":
    # identity_block(t_size=4, n_step=16); input (N, t_size, n_step, n_step)
    N, C, H, W = 2, 4, 16, 16

    key = jax.random.PRNGKey(0)
    kx, kw, kb = jax.random.split(key, 3)

    x = jax.random.normal(kx, (N, C, H, W), dtype=jnp.float32)

    # Deterministic synthetic parameters (shapes match nn.Conv2d / nn.LayerNorm).
    fan_in = C * 3 * 3
    bound = 1.0 / (fan_in ** 0.5)
    conv_w = jax.random.uniform(kw, (C, C, 3, 3), jnp.float32, -bound, bound)
    conv_b = jax.random.uniform(kb, (C,), jnp.float32, -bound, bound)
    ln_gamma = jnp.ones((W,), jnp.float32)
    ln_beta = jnp.zeros((W,), jnp.float32)

    out = identity_block_forward(x, conv_w, conv_b, ln_gamma, ln_beta)
    out = jax.block_until_ready(out)

    ref = _reference(x, conv_w, conv_b, ln_gamma, ln_beta)
    assert out.shape == (N, C, H, W)
    assert jnp.allclose(out, ref, atol=1e-4, rtol=1e-4), "mismatch vs reference"

    print("KERNEL_OK")
</pallas_src>

<mosaic_0001>
module attributes {stable_mosaic.version = 11 : i64} {
  func.func @_identity_block_kernel(%arg0: i32, %arg1: memref<37x512xf32, #tpu.memory_space<vmem>>, %arg2: memref<4x37xf32, #tpu.memory_space<vmem>>, %arg3: memref<1x512xf32, #tpu.memory_space<vmem>>, %arg4: memref<1x512xf32, #tpu.memory_space<vmem>>, %arg5: memref<512x512xf32, #tpu.memory_space<vmem>>, %arg6: memref<4x512xf32, #tpu.memory_space<vmem>>) attributes {dimension_semantics = [#tpu.dimension_semantics<arbitrary>], iteration_bounds = array<i64: 1>, scalar_prefetch = 0 : i64, scratch_operands = 0 : i64, tpu.core_type = #tpu.core_type<tc>, window_params = [{pipeline_mode = #tpu.pipeline_mode<synchronous>, transform_indices = @transform_0, window_bounds = array<i64: 37, 512>}, {pipeline_mode = #tpu.pipeline_mode<synchronous>, transform_indices = @transform_1, window_bounds = array<i64: 4, 37>}, {pipeline_mode = #tpu.pipeline_mode<synchronous>, transform_indices = @transform_2, window_bounds = array<i64: 1, 512>}, {pipeline_mode = #tpu.pipeline_mode<synchronous>, transform_indices = @transform_3, window_bounds = array<i64: 1, 512>}, {pipeline_mode = #tpu.pipeline_mode<synchronous>, transform_indices = @transform_4, window_bounds = array<i64: 512, 512>}, {pipeline_mode = #tpu.pipeline_mode<synchronous>, transform_indices = @transform_5, window_bounds = array<i64: 4, 512>}]} {
    %c0 = arith.constant 0 : index
    %c0_0 = arith.constant 0 : index
    %0 = vector.load %arg2[%c0, %c0_0] : memref<4x37xf32, #tpu.memory_space<vmem>>, vector<4x37xf32>
    %c0_1 = arith.constant 0 : index
    %c0_2 = arith.constant 0 : index
    %1 = vector.load %arg1[%c0_1, %c0_2] : memref<37x512xf32, #tpu.memory_space<vmem>>, vector<37x512xf32>
    %cst = arith.constant dense<0.000000e+00> : vector<4x512xf32>
    %2 = tpu.matmul %0, %1, %cst {dimension_numbers = #tpu.dot_dimension_numbers<[1], [0], [0], [1], [0, 0, 1, 1], [], []>} : vector<4x37xf32>, vector<37x512xf32>, vector<4x512xf32> -> vector<4x512xf32>
    %c0_3 = arith.constant 0 : index
    %c0_4 = arith.constant 0 : index
    %3 = vector.load %arg5[%c0_3, %c0_4] : memref<512x512xf32, #tpu.memory_space<vmem>>, vector<512x512xf32>
    %cst_5 = arith.constant dense<0.000000e+00> : vector<4x512xf32>
    %4 = tpu.matmul %2, %3, %cst_5 {dimension_numbers = #tpu.dot_dimension_numbers<[1], [0], [0], [1], [0, 0, 1, 1], [], []>} : vector<4x512xf32>, vector<512x512xf32>, vector<4x512xf32> -> vector<4x512xf32>
    %5 = arith.subf %2, %4 : vector<4x512xf32>
    %6 = arith.mulf %5, %5 : vector<4x512xf32>
    %cst_6 = arith.constant dense<0.000000e+00> : vector<4x512xf32>
    %7 = tpu.matmul %6, %3, %cst_6 {dimension_numbers = #tpu.dot_dimension_numbers<[1], [0], [0], [1], [0, 0, 1, 1], [], []>} : vector<4x512xf32>, vector<512x512xf32>, vector<4x512xf32> -> vector<4x512xf32>
    %cst_7 = arith.constant 9.99999974E-6 : f32
    %8 = vector.broadcast %cst_7 : f32 to vector<4x512xf32>
    %9 = arith.addf %7, %8 : vector<4x512xf32>
    %10 = math.rsqrt %9 : vector<4x512xf32>
    %11 = arith.mulf %5, %10 : vector<4x512xf32>
    %c0_8 = arith.constant 0 : index
    %c0_9 = arith.constant 0 : index
    %12 = vector.load %arg3[%c0_8, %c0_9] : memref<1x512xf32, #tpu.memory_space<vmem>>, vector<1x512xf32>
    %13 = vector.broadcast %12 : vector<1x512xf32> to vector<4x512xf32>
    %14 = arith.mulf %11, %13 : vector<4x512xf32>
    %c0_10 = arith.constant 0 : index
    %c0_11 = arith.constant 0 : index
    %15 = vector.load %arg4[%c0_10, %c0_11] : memref<1x512xf32, #tpu.memory_space<vmem>>, vector<1x512xf32>
    %16 = vector.broadcast %15 : vector<1x512xf32> to vector<4x512xf32>
    %17 = arith.addf %14, %16 : vector<4x512xf32>
    %cst_12 = arith.constant 0.000000e+00 : f32
    %18 = vector.broadcast %cst_12 : f32 to vector<4x512xf32>
    %19 = arith.maximumf %17, %18 : vector<4x512xf32>
    %c0_13 = arith.constant 0 : index
    %c0_14 = arith.constant 0 : index
    %20 = vector.load %arg6[%c0_13, %c0_14] : memref<4x512xf32, #tpu.memory_space<vmem>>, vector<4x512xf32>
    tpu.vector_store %arg6[%c0_13, %c0_14], %19 {strides = array<i32>} : memref<4x512xf32, #tpu.memory_space<vmem>>, vector<4x512xf32>,
    return
  }
  func.func @transform_0(%arg0: i32) -> (i32, i32) {
    %c0_i32 = arith.constant 0 : i32
    %c0_i32_0 = arith.constant 0 : i32
    %c0_i32_1 = arith.constant 0 : i32
    return %c0_i32, %c0_i32_0 : i32, i32
  }
  func.func @transform_1(%arg0: i32) -> (i32, i32) {
    %c0_i32 = arith.constant 0 : i32
    %c0_i32_0 = arith.constant 0 : i32
    %c0_i32_1 = arith.constant 0 : i32
    return %c0_i32, %c0_i32_0 : i32, i32
  }
  func.func @transform_2(%arg0: i32) -> (i32, i32) {
    %c0_i32 = arith.constant 0 : i32
    %c0_i32_0 = arith.constant 0 : i32
    %c0_i32_1 = arith.constant 0 : i32
    return %c0_i32, %c0_i32_0 : i32, i32
  }
  func.func @transform_3(%arg0: i32) -> (i32, i32) {
    %c0_i32 = arith.constant 0 : i32
    %c0_i32_0 = arith.constant 0 : i32
    %c0_i32_1 = arith.constant 0 : i32
    return %c0_i32, %c0_i32_0 : i32, i32
  }
  func.func @transform_4(%arg0: i32) -> (i32, i32) {
    %c0_i32 = arith.constant 0 : i32
    %c0_i32_0 = arith.constant 0 : i32
    %c0_i32_1 = arith.constant 0 : i32
    return %c0_i32, %c0_i32_0 : i32, i32
  }
  func.func @transform_5(%arg0: i32) -> (i32, i32) {
    %c0_i32 = arith.constant 0 : i32
    %c0_i32_0 = arith.constant 0 : i32
    %c0_i32_1 = arith.constant 0 : i32
    return %c0_i32, %c0_i32_0 : i32, i32
  }
}

</mosaic_0001>

<llo_original>
// kernel: tpu_custom_call.1
$region0: #{tpu_custom_call.1}
  #allocation0 [shape = 'u32[]', space=smem, size = 0x4, offset = 0x4, fixed_abs, tag = 'smem constant byte address 0x4 - core index']
  #allocation1 [shape = 'u32[144,128]{1,0:T(1,128)}', space=vmem, size = 0x12000, scoped, tag = 'internal scratch']
  %s0 = inlined_call_operand.hbm [shape: f32[37,512], index: 0, kind: input, shape index: {}]
  %s1 = inlined_call_operand.hbm [shape: f32[4,37], index: 1, kind: input, shape index: {}]
  %s2 = inlined_call_operand.vmem [shape: f32[1,512], index: 2, kind: input, shape index: {}]
  %s3 = inlined_call_operand.vmem [shape: f32[1,512], index: 3, kind: input, shape index: {}]
  %s4 = inlined_call_operand.hbm [shape: f32[512,512], index: 4, kind: input, shape index: {}]
  %s5 = inlined_call_operand.hbm [shape: f32[4,512], index: 5, kind: output, shape index: {}]
  %s6 = sld [smem:[#allocation0]]
  $region42: #{tpu_custom_call.1} parent=0
    _
  %s8 = ssub.s32 1, %s6
  %s9 = scalar_select 0, %s8, %s6
  $region1: #{tpu_custom_call.1} parent=0
    #allocation2 [shape = 'u8[81920]{0}', space=vmem, size = 0x14000, scoped, tag = 'input window, operand 0, single buffered']
    #allocation3 [shape = 's32[1]{0}', space=sflag, size = 0x4, scoped, tag = 'scoped memory for tpu_custom_call.1']
    #allocation4 [shape = 's32[1]{0}', space=sflag, size = 0x4, scoped, tag = 'scoped memory for tpu_custom_call.1']
    #allocation5 [shape = 'u8[2048]{0}', space=vmem, size = 0x800, scoped, tag = 'input window, operand 1, single buffered']
    #allocation6 [shape = 's32[1]{0}', space=sflag, size = 0x4, scoped, tag = 'scoped memory for tpu_custom_call.1']
    #allocation7 [shape = 'u8[1048576]{0}', space=vmem, size = 0x100000, scoped, tag = 'input window, operand 4, single buffered']
    #allocation8 [shape = 'u8[8192]{0}', space=vmem, size = 0x2000, scoped, tag = 'output window, operand 0, single buffered']
    %10 = vsyncpa [#allocation3], 0
    %11 = vsyncpa [#allocation6], 0
    %12 = vsyncpa [#allocation4], 0
    // Predicated region
    $region2: #{tpu_custom_call.1} parent=1 // pred_check
      _
    $region3: #{tpu_custom_call.1} parent=1 // pred_check_branch
      %14 = sbr.rel (0) target = $region5
    $region4: #{tpu_custom_call.1} parent=1 // pred_region
      %s16 = ssub.s32 2560, 2560
      %17 = vsyncadd [#allocation3], %s16
      %s18 = sshll.u32 [#allocation2], 4
      %s19 = int_to_ptr.vmem [resolvable:$true] %s18
      %24 = dma.hbm_to_vmem [thread:$0]  %s0, 2560, %s19, [#allocation3], 512, 512, 32
    $region5: #{tpu_custom_call.1} parent=1 // pred_fallthru
      _
    // Predicated region
    $region6: #{tpu_custom_call.1} parent=1 // pred_check
      _
    $region7: #{tpu_custom_call.1} parent=1 // pred_check_branch
      %26 = sbr.rel (0) target = $region9
    $region8: #{tpu_custom_call.1} parent=1 // pred_region
      %s28 = ssub.s32 64, 64
      %29 = vsyncadd [#allocation6], %s28
      %s31 = sshll.u32 [#allocation5], 4
      %s32 = int_to_ptr.vmem [resolvable:$true] %s31
      %34 = dma.hbm_to_vmem [thread:$0]  %s1, 64, %s32, [#allocation6]
    $region9: #{tpu_custom_call.1} parent=1 // pred_fallthru
      _
    // Predicated region
    $region10: #{tpu_custom_call.1} parent=1 // pred_check
      _
    $region11: #{tpu_custom_call.1} parent=1 // pred_check_branch
      %36 = sbr.rel (0) target = $region13
    $region12: #{tpu_custom_call.1} parent=1 // pred_region
      _
    $region13: #{tpu_custom_call.1} parent=1 // pred_fallthru
      _
    // Predicated region
    $region14: #{tpu_custom_call.1} parent=1 // pred_check
      _
    $region15: #{tpu_custom_call.1} parent=1 // pred_check_branch
      %38 = sbr.rel (0) target = $region17
    $region16: #{tpu_custom_call.1} parent=1 // pred_region
      _
    $region17: #{tpu_custom_call.1} parent=1 // pred_fallthru
      _
    // Predicated region
    $region18: #{tpu_custom_call.1} parent=1 // pred_check
      _
    $region19: #{tpu_custom_call.1} parent=1 // pred_check_branch
      %40 = sbr.rel (0) target = $region21
    $region20: #{tpu_custom_call.1} parent=1 // pred_region
      %s42 = ssub.s32 32768, 32768
      %43 = vsyncadd [#allocation6], %s42
      %s44 = sshll.u32 [#allocation7], 4
      %s45 = int_to_ptr.vmem [resolvable:$true] %s44
      %50 = dma.hbm_to_vmem [thread:$0]  %s4, 32768, %s45, [#allocation6], 512, 512, 32
    $region21: #{tpu_custom_call.1} parent=1 // pred_fallthru
      _
    // Predicated region
    $region22: #{tpu_custom_call.1} parent=1 // pred_check
      _
    $region23: #{tpu_custom_call.1} parent=1 // pred_check_branch
      %52 = sbr.rel (0) target = $region25
    $region24: #{tpu_custom_call.1} parent=1 // pred_region
      %53 = dma.done [#allocation3], 2560
    $region25: #{tpu_custom_call.1} parent=1 // pred_fallthru
      _
    // Predicated region
    $region26: #{tpu_custom_call.1} parent=1 // pred_check
      _
    $region27: #{tpu_custom_call.1} parent=1 // pred_check_branch
      %55 = sbr.rel (0) target = $region29
    $region28: #{tpu_custom_call.1} parent=1 // pred_region
      %56 = dma.done [#allocation6], 64
    $region29: #{tpu_custom_call.1} parent=1 // pred_fallthru
      _
    // Predicated region
    $region30: #{tpu_custom_call.1} parent=1 // pred_check
      _
    $region31: #{tpu_custom_call.1} parent=1 // pred_check_branch
      %58 = sbr.rel (0) target = $region33
    $region32: #{tpu_custom_call.1} parent=1 // pred_region
      %59 = dma.done [#allocation6], 32768
    $region33: #{tpu_custom_call.1} parent=1 // pred_fallthru
      _
    %v60 = vld [vmem:[#allocation5] sm:$0xf]
    %v61 = vld [vmem:[#allocation2] sm:$0xff]
    %v62 = vld [vmem:[#allocation2 + $0x8] sm:$0xff]
    %v63 = vld [vmem:[#allocation2 + $0x10] sm:$0xff]
    %v64 = vld [vmem:[#allocation2 + $0x18] sm:$0xff]
    %v65 = vld [vmem:[#allocation2 + $0x20] sm:$0xff]
    %v66 = vld [vmem:[#allocation2 + $0x28] sm:$0xff]
    %v67 = vld [vmem:[#allocation2 + $0x30] sm:$0xff]
    %v68 = vld [vmem:[#allocation2 + $0x38] sm:$0xff]
    %v69 = vld [vmem:[#allocation2 + $0x40] sm:$0xff]
    %v70 = vld [vmem:[#allocation2 + $0x48] sm:$0xff]
    %v71 = vld [vmem:[#allocation2 + $0x50] sm:$0xff]
    %v72 = vld [vmem:[#allocation2 + $0x58] sm:$0xff]
    %v73 = vld [vmem:[#allocation2 + $0x60] sm:$0xff]
    %v74 = vld [vmem:[#allocation2 + $0x68] sm:$0xff]
    %v75 = vld [vmem:[#allocation2 + $0x70] sm:$0xff]
    %v76 = vld [vmem:[#allocation2 + $0x78] sm:$0xff]
    %v77 = vld [vmem:[#allocation2 + $0x80] sm:$0x1f]
    %v78 = vld [vmem:[#allocation2 + $0x88] sm:$0x1f]
    %v79 = vld [vmem:[#allocation2 + $0x90] sm:$0x1f]
    %v80 = vld [vmem:[#allocation2 + $0x98] sm:$0x1f]
    %vm81 = vcmask 302080
    %v83 = vsel %vm81, %v60, 0
    %vm85 = vcmask 1044480
    %v87 = vsel %vm85, %v77, 0
    %v90 = vsel %vm85, %v78, 0
    %v93 = vsel %vm85, %v79, 0
    %v96 = vsel %vm85, %v80, 0
    %98 = vmatprep.subr.mxu0 %v62
    %99 = vmatpush1.msra.mxu0 %v61
    %100 = vmatprep.subr.mxu0 %v66
    %101 = vmatpush1.msra.mxu0 %v65
    %102 = vmatprep.subr.mxu0 %v70
    %103 = vmatpush1.msra.mxu0 %v69
    %104 = vmatprep.subr.mxu0 %v74
    %105 = vmatpush1.msra.mxu0 %v73
    %106 = vmatprep.subr.mxu0 %v90
    %107 = vmatpush1.msra.mxu0 %v87
    %108 = vmatprep.subr.mxu0 0.0
    %109 = vmatpush1.msra.mxu0 0.0
    %110 = vmatprep.subr.mxu0 0.0
    %111 = vmatpush1.msra.mxu0 0.0
    %112 = vmatprep.subr.mxu0 0.0
    %113 = vmatpush1.msra.mxu0 0.0
    %114 = vmatprep.subr.mxu0 0.0
    %115 = vmatpush1.msra.mxu0 0.0
    %116 = vmatprep.subr.mxu0 0.0
    %117 = vmatpush1.msra.mxu0 0.0
    %118 = vmatprep.subr.mxu0 0.0
    %119 = vmatpush1.msra.mxu0 0.0
    %120 = vmatprep.subr.mxu0 0.0
    %121 = vmatpush1.msra.mxu0 0.0
    %122 = vmatprep.subr.mxu0 0.0
    %123 = vmatpush1.msra.mxu0 0.0
    %124 = vmatprep.subr.mxu0 0.0
    %125 = vmatpush1.msra.mxu0 0.0
    %126 = vmatprep.subr.mxu0 0.0
    %127 = vmatpush1.msra.mxu0 0.0
    %128 = vmatprep.subr.mxu0 0.0
    %129 = vmatpush1.msra.mxu0 0.0
    %130 = vmatprep.subr.mxu0 0.0
    %131 = vmatpush1.msra.mxu0 0.0
    %132 = vmatprep.subr.mxu0 0.0
    %133 = vmatpush1.msra.mxu0 0.0
    %134 = vmatprep.subr.mxu0 0.0
    %135 = vmatpush1.msra.mxu0 0.0
    %136 = vmatprep.subr.mxu0 0.0
    %137 = vmatpush1.msra.mxu0 0.0
    %138 = vmatprep.subr.mxu0 0.0
    %139 = vmatpush1.msra.mxu0 0.0
    %140 = vmatprep.subr.mxu0 0.0
    %141 = vmatpush1.msra.mxu0 0.0
    %142 = vmatprep.subr.mxu0 0.0
    %143 = vmatpush1.msra.mxu0 0.0
    %144 = vmatprep.subr.mxu0 0.0
    %145 = vmatpush1.msra.mxu0 0.0
    %146 = vmatprep.subr.mxu0 0.0
    %147 = vmatpush1.msra.mxu0 0.0
    %148 = vmatprep.subr.mxu0 0.0
    %149 = vmatpush1.msra.mxu0 0.0
    %150 = vmatprep.subr.mxu0 0.0
    %151 = vmatpush1.msra.mxu0 0.0
    %152 = vmatprep.subr.mxu0 0.0
    %153 = vmatpush1.msra.mxu0 0.0
    %154 = vmatprep.subr.mxu0 0.0
    %155 = vmatpush1.msra.mxu0 0.0
    %156 = vmatprep.subr.mxu0 0.0
    %157 = vmatpush1.msra.mxu0 0.0
    %158 = vmatprep.subr.mxu0 0.0
    %159 = vmatpush1.msra.mxu0 0.0
    %160 = vmatprep.subr.mxu0 0.0
    %161 = vmatpush1.msra.mxu0 0.0
    %162 = vmatprep.mubr.f32.mxu0 0.0
    %163 = vmatmul.mubr.f32.gmra.mrb[0].mxu0 %v83
    %v164 = vpop.f32.mrb[0].mxu0
    %v165 = vadd.f32 0.0, %v164
    %v166 = vpop.f32.mrb[0].mxu0
    %v167 = vadd.f32 0.0, %v166
    %168 = vdwg.mxu0
    %169 = vmatprep.subr.mxu0 %v64
    %170 = vmatpush1.msra.mxu0 %v63
    %171 = vmatprep.subr.mxu0 %v68
    %172 = vmatpush1.msra.mxu0 %v67
    %173 = vmatprep.subr.mxu0 %v72
    %174 = vmatpush1.msra.mxu0 %v71
    %175 = vmatprep.subr.mxu0 %v76
    %176 = vmatpush1.msra.mxu0 %v75
    %177 = vmatprep.subr.mxu0 %v96
    %178 = vmatpush1.msra.mxu0 %v93
    %179 = vmatprep.subr.mxu0 0.0
    %180 = vmatpush1.msra.mxu0 0.0
    %181 = vmatprep.subr.mxu0 0.0
    %182 = vmatpush1.msra.mxu0 0.0
    %183 = vmatprep.subr.mxu0 0.0
    %184 = vmatpush1.msra.mxu0 0.0
    %185 = vmatprep.subr.mxu0 0.0
    %186 = vmatpush1.msra.mxu0 0.0
    %187 = vmatprep.subr.mxu0 0.0
    %188 = vmatpush1.msra.mxu0 0.0
    %189 = vmatprep.subr.mxu0 0.0
    %190 = vmatpush1.msra.mxu0 0.0
    %191 = vmatprep.subr.mxu0 0.0
    %192 = vmatpush1.msra.mxu0 0.0
    %193 = vmatprep.subr.mxu0 0.0
    %194 = vmatpush1.msra.mxu0 0.0
    %195 = vmatprep.subr.mxu0 0.0
    %196 = vmatpush1.msra.mxu0 0.0
    %197 = vmatprep.subr.mxu0 0.0
    %198 = vmatpush1.msra.mxu0 0.0
    %199 = vmatprep.subr.mxu0 0.0
    %200 = vmatpush1.msra.mxu0 0.0
    %201 = vmatprep.subr.mxu0 0.0
    %202 = vmatpush1.msra.mxu0 0.0
    %203 = vmatprep.subr.mxu0 0.0
    %204 = vmatpush1.msra.mxu0 0.0
    %205 = vmatprep.subr.mxu0 0.0
    %206 = vmatpush1.msra.mxu0 0.0
    %207 = vmatprep.subr.mxu0 0.0
    %208 = vmatpush1.msra.mxu0 0.0
    %209 = vmatprep.subr.mxu0 0.0
    %210 = vmatpush1.msra.mxu0 0.0
    %211 = vmatprep.subr.mxu0 0.0
    %212 = vmatpush1.msra.mxu0 0.0
    %213 = vmatprep.subr.mxu0 0.0
    %214 = vmatpush1.msra.mxu0 0.0
    %215 = vmatprep.subr.mxu0 0.0
    %216 = vmatpush1.msra.mxu0 0.0
    %217 = vmatprep.subr.mxu0 0.0
    %218 = vmatpush1.msra.mxu0 0.0
    %219 = vmatprep.subr.mxu0 0.0
    %220 = vmatpush1.msra.mxu0 0.0
    %221 = vmatprep.subr.mxu0 0.0
    %222 = vmatpush1.msra.mxu0 0.0
    %223 = vmatprep.subr.mxu0 0.0
    %224 = vmatpush1.msra.mxu0 0.0
    %225 = vmatprep.subr.mxu0 0.0
    %226 = vmatpush1.msra.mxu0 0.0
    %227 = vmatprep.subr.mxu0 0.0
    %228 = vmatpush1.msra.mxu0 0.0
    %229 = vmatprep.subr.mxu0 0.0
    %230 = vmatpush1.msra.mxu0 0.0
    %231 = vmatprep.subr.mxu0 0.0
    %232 = vmatpush1.msra.mxu0 0.0
    %233 = vmatprep.mubr.f32.mxu0 0.0
    %234 = vmatmul.mubr.f32.gmra.mrb[0].mxu0 %v83
    %v235 = vpop.f32.mrb[0].mxu0
    %v236 = vadd.f32 0.0, %v235
    %v237 = vpop.f32.mrb[0].mxu0
    %v238 = vadd.f32 0.0, %v237
    %239 = vdwg.mxu0
    %v240 = vld [vmem:[#allocation7] sm:$0xff]
    %v241 = vld [vmem:[#allocation7 + $0x8] sm:$0xff]
    %v242 = vld [vmem:[#allocation7 + $0x10] sm:$0xff]
    %v243 = vld [vmem:[#allocation7 + $0x18] sm:$0xff]
    %v244 = vld [vmem:[#allocation7 + $0x20] sm:$0xff]
    %v245 = vld [vmem:[#allocation7 + $0x28] sm:$0xff]
    %v246 = vld [vmem:[#allocation7 + $0x30] sm:$0xff]
    %v247 = vld [vmem:[#allocation7 + $0x38] sm:$0xff]
    %v248 = vld [vmem:[#allocation7 + $0x40] sm:$0xff]
    %v249 = vld [vmem:[#allocation7 + $0x48] sm:$0xff]
    %v250 = vld [vmem:[#allocation7 + $0x50] sm:$0xff]
    %v251 = vld [vmem:[#allocation7 + $0x58] sm:$0xff]
    %v252 = vld [vmem:[#allocation7 + $0x60] sm:$0xff]
    %v253 = vld [vmem:[#allocation7 + $0x68] sm:$0xff]
    %v254 = vld [vmem:[#allocation7 + $0x70] sm:$0xff]
    %v255 = vld [vmem:[#allocation7 + $0x78] sm:$0xff]
    %v256 = vld [vmem:[#allocation7 + $0x80] sm:$0xff]
    %v257 = vld [vmem:[#allocation7 + $0x88] sm:$0xff]
    %v258 = vld [vmem:[#allocation7 + $0x90] sm:$0xff]
    %v259 = vld [vmem:[#allocation7 + $0x98] sm:$0xff]
    %v260 = vld [vmem:[#allocation7 + $0xa0] sm:$0xff]
    %v261 = vld [vmem:[#allocation7 + $0xa8] sm:$0xff]
    %v262 = vld [vmem:[#allocation7 + $0xb0] sm:$0xff]
    %v263 = vld [vmem:[#allocation7 + $0xb8] sm:$0xff]
    %v264 = vld [vmem:[#allocation7 + $0xc0] sm:$0xff]
    %v265 = vld [vmem:[#allocation7 + $0xc8] sm:$0xff]
    %v266 = vld [vmem:[#allocation7 + $0xd0] sm:$0xff]
    %v267 = vld [vmem:[#allocation7 + $0xd8] sm:$0xff]
    %v268 = vld [vmem:[#allocation7 + $0xe0] sm:$0xff]
    %v269 = vld [vmem:[#allocation7 + $0xe8] sm:$0xff]
    %v270 = vld [vmem:[#allocation7 + $0xf0] sm:$0xff]
    %v271 = vld [vmem:[#allocation7 + $0xf8] sm:$0xff]
    %v272 = vld [vmem:[#allocation7 + $0x100] sm:$0xff]
    %v273 = vld [vmem:[#allocation7 + $0x108] sm:$0xff]
    %v274 = vld [vmem:[#allocation7 + $0x110] sm:$0xff]
    %v275 = vld [vmem:[#allocation7 + $0x118] sm:$0xff]
    %v276 = vld [vmem:[#allocation7 + $0x120] sm:$0xff]
    %v277 = vld [vmem:[#allocation7 + $0x128] sm:$0xff]
    %v278 = vld [vmem:[#allocation7 + $0x130] sm:$0xff]
    %v279 = vld [vmem:[#allocation7 + $0x138] sm:$0xff]
    %v280 = vld [vmem:[#allocation7 + $0x140] sm:$0xff]
    %v281 = vld [vmem:[#allocation7 + $0x148] sm:$0xff]
    %v282 = vld [vmem:[#allocation7 + $0x150] sm:$0xff]
    %v283 = vld [vmem:[#allocation7 + $0x158] sm:$0xff]
    %v284 = vld [vmem:[#allocation7 + $0x160] sm:$0xff]
    %v285 = vld [vmem:[#allocation7 + $0x168] sm:$0xff]
    %v286 = vld [vmem:[#allocation7 + $0x170] sm:$0xff]
    %v287 = vld [vmem:[#allocation7 + $0x178] sm:$0xff]
    %v288 = vld [vmem:[#allocation7 + $0x180] sm:$0xff]
    %v289 = vld [vmem:[#allocation7 + $0x188] sm:$0xff]
    %v290 = vld [vmem:[#allocation7 + $0x190] sm:$0xff]
    %v291 = vld [vmem:[#allocation7 + $0x198] sm:$0xff]
    %v292 = vld [vmem:[#allocation7 + $0x1a0] sm:$0xff]
    %v293 = vld [vmem:[#allocation7 + $0x1a8] sm:$0xff]
    %v294 = vld [vmem:[#allocation7 + $0x1b0] sm:$0xff]
    %v295 = vld [vmem:[#allocation7 + $0x1b8] sm:$0xff]
    %v296 = vld [vmem:[#allocation7 + $0x1c0] sm:$0xff]
    %v297 = vld [vmem:[#allocation7 + $0x1c8] sm:$0xff]
    %v298 = vld [vmem:[#allocation7 + $0x1d0] sm:$0xff]
    %v299 = vld [vmem:[#allocation7 + $0x1d8] sm:$0xff]
    %v300 = vld [vmem:[#allocation7 + $0x1e0] sm:$0xff]
    %v301 = vld [vmem:[#allocation7 + $0x1e8] sm:$0xff]
    %v302 = vld [vmem:[#allocation7 + $0x1f0] sm:$0xff]
    %v303 = vld [vmem:[#allocation7 + $0x1f8] sm:$0xff]
    %v304 = vld [vmem:[#allocation7 + $0x200] sm:$0xff]
    %v305 = vld [vmem:[#allocation7 + $0x208] sm:$0xff]
    %v306 = vld [vmem:[#allocation7 + $0x210] sm:$0xff]
    %v307 = vld [vmem:[#allocation7 + $0x218] sm:$0xff]
    %v308 = vld [vmem:[#allocation7 + $0x220] sm:$0xff]
    %v309 = vld [vmem:[#allocation7 + $0x228] sm:$0xff]
    %v310 = vld [vmem:[#allocation7 + $0x230] sm:$0xff]
    %v311 = vld [vmem:[#allocation7 + $0x238] sm:$0xff]
    %v312 = vld [vmem:[#allocation7 + $0x240] sm:$0xff]
    %v313 = vld [vmem:[#allocation7 + $0x248] sm:$0xff]
    %v314 = vld [vmem:[#allocation7 + $0x250] sm:$0xff]
    %v315 = vld [vmem:[#allocation7 + $0x258] sm:$0xff]
    %v316 = vld [vmem:[#allocation7 + $0x260] sm:$0xff]
    %v317 = vld [vmem:[#allocation7 + $0x268] sm:$0xff]
    %v318 = vld [vmem:[#allocation7 + $0x270] sm:$0xff]
    %v319 = vld [vmem:[#allocation7 + $0x278] sm:$0xff]
    %v320 = vld [vmem:[#allocation7 + $0x280] sm:$0xff]
    %v321 = vld [vmem:[#allocation7 + $0x288] sm:$0xff]
    %v322 = vld [vmem:[#allocation7 + $0x290] sm:$0xff]
    %v323 = vld [vmem:[#allocation7 + $0x298] sm:$0xff]
    %v324 = vld [vmem:[#allocation7 + $0x2a0] sm:$0xff]
    %v325 = vld [vmem:[#allocation7 + $0x2a8] sm:$0xff]
    %v326 = vld [vmem:[#allocation7 + $0x2b0] sm:$0xff]
    %v327 = vld [vmem:[#allocation7 + $0x2b8] sm:$0xff]
    %v328 = vld [vmem:[#allocation7 + $0x2c0] sm:$0xff]
    %v329 = vld [vmem:[#allocation7 + $0x2c8] sm:$0xff]
    %v330 = vld [vmem:[#allocation7 + $0x2d0] sm:$0xff]
    %v331 = vld [vmem:[#allocation7 + $0x2d8] sm:$0xff]
    %v332 = vld [vmem:[#allocation7 + $0x2e0] sm:$0xff]
    %v333 = vld [vmem:[#allocation7 + $0x2e8] sm:$0xff]
    %v334 = vld [vmem:[#allocation7 + $0x2f0] sm:$0xff]
    %v335 = vld [vmem:[#allocation7 + $0x2f8] sm:$0xff]
    %v336 = vld [vmem:[#allocation7 + $0x300] sm:$0xff]
    %v337 = vld [vmem:[#allocation7 + $0x308] sm:$0xff]
    %v338 = vld [vmem:[#allocation7 + $0x310] sm:$0xff]
    %v339 = vld [vmem:[#allocation7 + $0x318] sm:$0xff]
    %v340 = vld [vmem:[#allocation7 + $0x320] sm:$0xff]
    %v341 = vld [vmem:[#allocation7 + $0x328] sm:$0xff]
    %v342 = vld [vmem:[#allocation7 + $0x330] sm:$0xff]
    %v343 = vld [vmem:[#allocation7 + $0x338] sm:$0xff]
    %v344 = vld [vmem:[#allocation7 + $0x340] sm:$0xff]
    %v345 = vld [vmem:[#allocation7 + $0x348] sm:$0xff]
    %v346 = vld [vmem:[#allocation7 + $0x350] sm:$0xff]
    %v347 = vld [vmem:[#allocation7 + $0x358] sm:$0xff]
    %v348 = vld [vmem:[#allocation7 + $0x360] sm:$0xff]
    %v349 = vld [vmem:[#allocation7 + $0x368] sm:$0xff]
    %v350 = vld [vmem:[#allocation7 + $0x370] sm:$0xff]
    %v351 = vld [vmem:[#allocation7 + $0x378] sm:$0xff]
    %v352 = vld [vmem:[#allocation7 + $0x380] sm:$0xff]
    %v353 = vld [vmem:[#allocation7 + $0x388] sm:$0xff]
    %v354 = vld [vmem:[#allocation7 + $0x390] sm:$0xff]
    %v355 = vld [vmem:[#allocation7 + $0x398] sm:$0xff]
    %v356 = vld [vmem:[#allocation7 + $0x3a0] sm:$0xff]
    %v357 = vld [vmem:[#allocation7 + $0x3a8] sm:$0xff]
    %v358 = vld [vmem:[#allocation7 + $0x3b0] sm:$0xff]
    %v359 = vld [vmem:[#allocation7 + $0x3b8] sm:$0xff]
    %v360 = vld [vmem:[#allocation7 + $0x3c0] sm:$0xff]
    %v361 = vld [vmem:[#allocation7 + $0x3c8] sm:$0xff]
    %v362 = vld [vmem:[#allocation7 + $0x3d0] sm:$0xff]
    %v363 = vld [vmem:[#allocation7 + $0x3d8] sm:$0xff]
    %v364 = vld [vmem:[#allocation7 + $0x3e0] sm:$0xff]
    %v365 = vld [vmem:[#allocation7 + $0x3e8] sm:$0xff]
    %v366 = vld [vmem:[#allocation7 + $0x3f0] sm:$0xff]
    %v367 = vld [vmem:[#allocation7 + $0x3f8] sm:$0xff]
    %v368 = vld [vmem:[#allocation7 + $0x400] sm:$0xff]
    %v369 = vld [vmem:[#allocation7 + $0x408] sm:$0xff]
    %v370 = vld [vmem:[#allocation7 + $0x410] sm:$0xff]
    %v371 = vld [vmem:[#allocation7 + $0x418] sm:$0xff]
    %v372 = vld [vmem:[#allocation7 + $0x420] sm:$0xff]
    %v373 = vld [vmem:[#allocation7 + $0x428] sm:$0xff]
    %v374 = vld [vmem:[#allocation7 + $0x430] sm:$0xff]
    %v375 = vld [vmem:[#allocation7 + $0x438] sm:$0xff]
    %v376 = vld [vmem:[#allocation7 + $0x440] sm:$0xff]
    %v377 = vld [vmem:[#allocation7 + $0x448] sm:$0xff]
    %v378 = vld [vmem:[#allocation7 + $0x450] sm:$0xff]
    %v379 = vld [vmem:[#allocation7 + $0x458] sm:$0xff]
    %v380 = vld [vmem:[#allocation7 + $0x460] sm:$0xff]
    %v381 = vld [vmem:[#allocation7 + $0x468] sm:$0xff]
    %v382 = vld [vmem:[#allocation7 + $0x470] sm:$0xff]
    %v383 = vld [vmem:[#allocation7 + $0x478] sm:$0xff]
    %v384 = vld [vmem:[#allocation7 + $0x480] sm:$0xff]
    %v385 = vld [vmem:[#allocation7 + $0x488] sm:$0xff]
    %v386 = vld [vmem:[#allocation7 + $0x490] sm:$0xff]
    %v387 = vld [vmem:[#allocation7 + $0x498] sm:$0xff]
    %v388 = vld [vmem:[#allocation7 + $0x4a0] sm:$0xff]
    %v389 = vld [vmem:[#allocation7 + $0x4a8] sm:$0xff]
    %v390 = vld [vmem:[#allocation7 + $0x4b0] sm:$0xff]
    %v391 = vld [vmem:[#allocation7 + $0x4b8] sm:$0xff]
    %v392 = vld [vmem:[#allocation7 + $0x4c0] sm:$0xff]
    %v393 = vld [vmem:[#allocation7 + $0x4c8] sm:$0xff]
    %v394 = vld [vmem:[#allocation7 + $0x4d0] sm:$0xff]
    %v395 = vld [vmem:[#allocation7 + $0x4d8] sm:$0xff]
    %v396 = vld [vmem:[#allocation7 + $0x4e0] sm:$0xff]
    %v397 = vld [vmem:[#allocation7 + $0x4e8] sm:$0xff]
    %v398 = vld [vmem:[#allocation7 + $0x4f0] sm:$0xff]
    %v399 = vld [vmem:[#allocation7 + $0x4f8] sm:$0xff]
    %v400 = vld [vmem:[#allocation7 + $0x500] sm:$0xff]
    %v401 = vld [vmem:[#allocation7 + $0x508] sm:$0xff]
    %v402 = vld [vmem:[#allocation7 + $0x510] sm:$0xff]
    %v403 = vld [vmem:[#allocation7 + $0x518] sm:$0xff]
    %v404 = vld [vmem:[#allocation7 + $0x520] sm:$0xff]
    %v405 = vld [vmem:[#allocation7 + $0x528] sm:$0xff]
    %v406 = vld [vmem:[#allocation7 + $0x530] sm:$0xff]
    %v407 = vld [vmem:[#allocation7 + $0x538] sm:$0xff]
    %v408 = vld [vmem:[#allocation7 + $0x540] sm:$0xff]
    %v409 = vld [vmem:[#allocation7 + $0x548] sm:$0xff]
    %v410 = vld [vmem:[#allocation7 + $0x550] sm:$0xff]
    %v411 = vld [vmem:[#allocation7 + $0x558] sm:$0xff]
    %v412 = vld [vmem:[#allocation7 + $0x560] sm:$0xff]
    %v413 = vld [vmem:[#allocation7 + $0x568] sm:$0xff]
    %v414 = vld [vmem:[#allocation7 + $0x570] sm:$0xff]
    %v415 = vld [vmem:[#allocation7 + $0x578] sm:$0xff]
    %v416 = vld [vmem:[#allocation7 + $0x580] sm:$0xff]
    %v417 = vld [vmem:[#allocation7 + $0x588] sm:$0xff]
    %v418 = vld [vmem:[#allocation7 + $0x590] sm:$0xff]
    %v419 = vld [vmem:[#allocation7 + $0x598] sm:$0xff]
    %v420 = vld [vmem:[#allocation7 + $0x5a0] sm:$0xff]
    %v421 = vld [vmem:[#allocation7 + $0x5a8] sm:$0xff]
    %v422 = vld [vmem:[#allocation7 + $0x5b0] sm:$0xff]
    %v423 = vld [vmem:[#allocation7 + $0x5b8] sm:$0xff]
    %v424 = vld [vmem:[#allocation7 + $0x5c0] sm:$0xff]
    %v425 = vld [vmem:[#allocation7 + $0x5c8] sm:$0xff]
    %v426 = vld [vmem:[#allocation7 + $0x5d0] sm:$0xff]
    %v427 = vld [vmem:[#allocation7 + $0x5d8] sm:$0xff]
    %v428 = vld [vmem:[#allocation7 + $0x5e0] sm:$0xff]
    %v429 = vld [vmem:[#allocation7 + $0x5e8] sm:$0xff]
    %v430 = vld [vmem:[#allocation7 + $0x5f0] sm:$0xff]
    %v431 = vld [vmem:[#allocation7 + $0x5f8] sm:$0xff]
    %v432 = vld [vmem:[#allocation7 + $0x600] sm:$0xff]
    %v433 = vld [vmem:[#allocation7 + $0x608] sm:$0xff]
    %v434 = vld [vmem:[#allocation7 + $0x610] sm:$0xff]
    %v435 = vld [vmem:[#allocation7 + $0x618] sm:$0xff]
    %v436 = vld [vmem:[#allocation7 + $0x620] sm:$0xff]
    %v437 = vld [vmem:[#allocation7 + $0x628] sm:$0xff]
    %v438 = vld [vmem:[#allocation7 + $0x630] sm:$0xff]
    %v439 = vld [vmem:[#allocation7 + $0x638] sm:$0xff]
    %v440 = vld [vmem:[#allocation7 + $0x640] sm:$0xff]
    %v441 = vld [vmem:[#allocation7 + $0x648] sm:$0xff]
    %v442 = vld [vmem:[#allocation7 + $0x650] sm:$0xff]
    %v443 = vld [vmem:[#allocation7 + $0x658] sm:$0xff]
    %v444 = vld [vmem:[#allocation7 + $0x660] sm:$0xff]
    %v445 = vld [vmem:[#allocation7 + $0x668] sm:$0xff]
    %v446 = vld [vmem:[#allocation7 + $0x670] sm:$0xff]
    %v447 = vld [vmem:[#allocation7 + $0x678] sm:$0xff]
    %v448 = vld [vmem:[#allocation7 + $0x680] sm:$0xff]
    %v449 = vld [vmem:[#allocation7 + $0x688] sm:$0xff]
    %v450 = vld [vmem:[#allocation7 + $0x690] sm:$0xff]
    %v451 = vld [vmem:[#allocation7 + $0x698] sm:$0xff]
    %v452 = vld [vmem:[#allocation7 + $0x6a0] sm:$0xff]
    %v453 = vld [vmem:[#allocation7 + $0x6a8] sm:$0xff]
    %v454 = vld [vmem:[#allocation7 + $0x6b0] sm:$0xff]
    %v455 = vld [vmem:[#allocation7 + $0x6b8] sm:$0xff]
    %v456 = vld [vmem:[#allocation7 + $0x6c0] sm:$0xff]
    %v457 = vld [vmem:[#allocation7 + $0x6c8] sm:$0xff]
    %v458 = vld [vmem:[#allocation7 + $0x6d0] sm:$0xff]
    %v459 = vld [vmem:[#allocation7 + $0x6d8] sm:$0xff]
    %v460 = vld [vmem:[#allocation7 + $0x6e0] sm:$0xff]
    %v461 = vld [vmem:[#allocation7 + $0x6e8] sm:$0xff]
    %v462 = vld [vmem:[#allocation7 + $0x6f0] sm:$0xff]
    %v463 = vld [vmem:[#allocation7 + $0x6f8] sm:$0xff]
    %v464 = vld [vmem:[#allocation7 + $0x700] sm:$0xff]
    %v465 = vld [vmem:[#allocation7 + $0x708] sm:$0xff]
    %v466 = vld [vmem:[#allocation7 + $0x710] sm:$0xff]
    %v467 = vld [vmem:[#allocation7 + $0x718] sm:$0xff]
    %v468 = vld [vmem:[#allocation7 + $0x720] sm:$0xff]
    %v469 = vld [vmem:[#allocation7 + $0x728] sm:$0xff]
    %v470 = vld [vmem:[#allocation7 + $0x730] sm:$0xff]
    %v471 = vld [vmem:[#allocation7 + $0x738] sm:$0xff]
    %v472 = vld [vmem:[#allocation7 + $0x740] sm:$0xff]
    %v473 = vld [vmem:[#allocation7 + $0x748] sm:$0xff]
    %v474 = vld [vmem:[#allocation7 + $0x750] sm:$0xff]
    %v475 = vld [vmem:[#allocation7 + $0x758] sm:$0xff]
    %v476 = vld [vmem:[#allocation7 + $0x760] sm:$0xff]
    %v477 = vld [vmem:[#allocation7 + $0x768] sm:$0xff]
    %v478 = vld [vmem:[#allocation7 + $0x770] sm:$0xff]
    %v479 = vld [vmem:[#allocation7 + $0x778] sm:$0xff]
    %v480 = vld [vmem:[#allocation7 + $0x780] sm:$0xff]
    %v481 = vld [vmem:[#allocation7 + $0x788] sm:$0xff]
    %v482 = vld [vmem:[#allocation7 + $0x790] sm:$0xff]
    %v483 = vld [vmem:[#allocation7 + $0x798] sm:$0xff]
    %v484 = vld [vmem:[#allocation7 + $0x7a0] sm:$0xff]
    %v485 = vld [vmem:[#allocation7 + $0x7a8] sm:$0xff]
    %v486 = vld [vmem:[#allocation7 + $0x7b0] sm:$0xff]
    %v487 = vld [vmem:[#allocation7 + $0x7b8] sm:$0xff]
    %v488 = vld [vmem:[#allocation7 + $0x7c0] sm:$0xff]
    %v489 = vld [vmem:[#allocation7 + $0x7c8] sm:$0xff]
    %v490 = vld [vmem:[#allocation7 + $0x7d0] sm:$0xff]
    %v491 = vld [vmem:[#allocation7 + $0x7d8] sm:$0xff]
    %v492 = vld [vmem:[#allocation7 + $0x7e0] sm:$0xff]
    %v493 = vld [vmem:[#allocation7 + $0x7e8] sm:$0xff]
    %v494 = vld [vmem:[#allocation7 + $0x7f0] sm:$0xff]
    %v495 = vld [vmem:[#allocation7 + $0x7f8] sm:$0xff]
    %496 = vmatprep.subr.mxu0 %v241
    %497 = vmatpush1.msra.mxu0 %v240
    %498 = vmatprep.subr.mxu0 %v245
    %499 = vmatpush1.msra.mxu0 %v244
    %500 = vmatprep.subr.mxu0 %v249
    %501 = vmatpush1.msra.mxu0 %v248
    %502 = vmatprep.subr.mxu0 %v253
    %503 = vmatpush1.msra.mxu0 %v252
    %504 = vmatprep.subr.mxu0 %v257
    %505 = vmatpush1.msra.mxu0 %v256
    %506 = vmatprep.subr.mxu0 %v261
    %507 = vmatpush1.msra.mxu0 %v260
    %508 = vmatprep.subr.mxu0 %v265
    %509 = vmatpush1.msra.mxu0 %v264
    %510 = vmatprep.subr.mxu0 %v269
    %511 = vmatpush1.msra.mxu0 %v268
    %512 = vmatprep.subr.mxu0 %v273
    %513 = vmatpush1.msra.mxu0 %v272
    %514 = vmatprep.subr.mxu0 %v277
    %515 = vmatpush1.msra.mxu0 %v276
    %516 = vmatprep.subr.mxu0 %v281
    %517 = vmatpush1.msra.mxu0 %v280
    %518 = vmatprep.subr.mxu0 %v285
    %519 = vmatpush1.msra.mxu0 %v284
    %520 = vmatprep.subr.mxu0 %v289
    %521 = vmatpush1.msra.mxu0 %v288
    %522 = vmatprep.subr.mxu0 %v293
    %523 = vmatpush1.msra.mxu0 %v292
    %524 = vmatprep.subr.mxu0 %v297
    %525 = vmatpush1.msra.mxu0 %v296
    %526 = vmatprep.subr.mxu0 %v301
    %527 = vmatpush1.msra.mxu0 %v300
    %528 = vmatprep.subr.mxu0 %v305
    %529 = vmatpush1.msra.mxu0 %v304
    %530 = vmatprep.subr.mxu0 %v309
    %531 = vmatpush1.msra.mxu0 %v308
    %532 = vmatprep.subr.mxu0 %v313
    %533 = vmatpush1.msra.mxu0 %v312
    %534 = vmatprep.subr.mxu0 %v317
    %535 = vmatpush1.msra.mxu0 %v316
    %536 = vmatprep.subr.mxu0 %v321
    %537 = vmatpush1.msra.mxu0 %v320
    %538 = vmatprep.subr.mxu0 %v325
    %539 = vmatpush1.msra.mxu0 %v324
    %540 = vmatprep.subr.mxu0 %v329
    %541 = vmatpush1.msra.mxu0 %v328
    %542 = vmatprep.subr.mxu0 %v333
    %543 = vmatpush1.msra.mxu0 %v332
    %544 = vmatprep.subr.mxu0 %v337
    %545 = vmatpush1.msra.mxu0 %v336
    %546 = vmatprep.subr.mxu0 %v341
    %547 = vmatpush1.msra.mxu0 %v340
    %548 = vmatprep.subr.mxu0 %v345
    %549 = vmatpush1.msra.mxu0 %v344
    %550 = vmatprep.subr.mxu0 %v349
    %551 = vmatpush1.msra.mxu0 %v348
    %552 = vmatprep.subr.mxu0 %v353
    %553 = vmatpush1.msra.mxu0 %v352
    %554 = vmatprep.subr.mxu0 %v357
    %555 = vmatpush1.msra.mxu0 %v356
    %556 = vmatprep.subr.mxu0 %v361
    %557 = vmatpush1.msra.mxu0 %v360
    %558 = vmatprep.subr.mxu0 %v365
    %559 = vmatpush1.msra.mxu0 %v364
    %560 = vmatprep.mubr.f32.mxu0 %v167
    %561 = vmatmul.mubr.f32.gmra.mrb[0].mxu0 %v165
    %v562 = vpop.f32.mrb[0].mxu0
    %v563 = vadd.f32 0.0, %v562
    %v564 = vpop.f32.mrb[0].mxu0
    %v565 = vadd.f32 0.0, %v564
    %566 = vdwg.mxu0
    %567 = vmatprep.subr.mxu0 %v369
    %568 = vmatpush1.msra.mxu0 %v368
    %569 = vmatprep.subr.mxu0 %v373
    %570 = vmatpush1.msra.mxu0 %v372
    %571 = vmatprep.subr.mxu0 %v377
    %572 = vmatpush1.msra.mxu0 %v376
    %573 = vmatprep.subr.mxu0 %v381
    %574 = vmatpush1.msra.mxu0 %v380
    %575 = vmatprep.subr.mxu0 %v385
    %576 = vmatpush1.msra.mxu0 %v384
    %577 = vmatprep.subr.mxu0 %v389
    %578 = vmatpush1.msra.mxu0 %v388
    %579 = vmatprep.subr.mxu0 %v393
    %580 = vmatpush1.msra.mxu0 %v392
    %581 = vmatprep.subr.mxu0 %v397
    %582 = vmatpush1.msra.mxu0 %v396
    %583 = vmatprep.subr.mxu0 %v401
    %584 = vmatpush1.msra.mxu0 %v400
    %585 = vmatprep.subr.mxu0 %v405
    %586 = vmatpush1.msra.mxu0 %v404
    %587 = vmatprep.subr.mxu0 %v409
    %588 = vmatpush1.msra.mxu0 %v408
    %589 = vmatprep.subr.mxu0 %v413
    %590 = vmatpush1.msra.mxu0 %v412
    %591 = vmatprep.subr.mxu0 %v417
    %592 = vmatpush1.msra.mxu0 %v416
    %593 = vmatprep.subr.mxu0 %v421
    %594 = vmatpush1.msra.mxu0 %v420
    %595 = vmatprep.subr.mxu0 %v425
    %596 = vmatpush1.msra.mxu0 %v424
    %597 = vmatprep.subr.mxu0 %v429
    %598 = vmatpush1.msra.mxu0 %v428
    %599 = vmatprep.subr.mxu0 %v433
    %600 = vmatpush1.msra.mxu0 %v432
    %601 = vmatprep.subr.mxu0 %v437
    %602 = vmatpush1.msra.mxu0 %v436
    %603 = vmatprep.subr.mxu0 %v441
    %604 = vmatpush1.msra.mxu0 %v440
    %605 = vmatprep.subr.mxu0 %v445
    %606 = vmatpush1.msra.mxu0 %v444
    %607 = vmatprep.subr.mxu0 %v449
    %608 = vmatpush1.msra.mxu0 %v448
    %609 = vmatprep.subr.mxu0 %v453
    %610 = vmatpush1.msra.mxu0 %v452
    %611 = vmatprep.subr.mxu0 %v457
    %612 = vmatpush1.msra.mxu0 %v456
    %613 = vmatprep.subr.mxu0 %v461
    %614 = vmatpush1.msra.mxu0 %v460
    %615 = vmatprep.subr.mxu0 %v465
    %616 = vmatpush1.msra.mxu0 %v464
    %617 = vmatprep.subr.mxu0 %v469
    %618 = vmatpush1.msra.mxu0 %v468
    %619 = vmatprep.subr.mxu0 %v473
    %620 = vmatpush1.msra.mxu0 %v472
    %621 = vmatprep.subr.mxu0 %v477
    %622 = vmatpush1.msra.mxu0 %v476
    %623 = vmatprep.subr.mxu0 %v481
    %624 = vmatpush1.msra.mxu0 %v480
    %625 = vmatprep.subr.mxu0 %v485
    %626 = vmatpush1.msra.mxu0 %v484
    %627 = vmatprep.subr.mxu0 %v489
    %628 = vmatpush1.msra.mxu0 %v488
    %629 = vmatprep.subr.mxu0 %v493
    %630 = vmatpush1.msra.mxu0 %v492
    %631 = vmatprep.mubr.f32.mxu0 %v238
    %632 = vmatmul.mubr.f32.gmra.mrb[0].mxu0 %v236
    %v633 = vpop.f32.mrb[0].mxu0
    %v634 = vadd.f32 %v563, %v633
    %v635 = vpop.f32.mrb[0].mxu0
    %v636 = vadd.f32 %v565, %v635
    %637 = vdwg.mxu0
    %638 = vmatprep.subr.mxu0 %v243
    %639 = vmatpush1.msra.mxu0 %v242
    %640 = vmatprep.subr.mxu0 %v247
    %641 = vmatpush1.msra.mxu0 %v246
    %642 = vmatprep.subr.mxu0 %v251
    %643 = vmatpush1.msra.mxu0 %v250
    %644 = vmatprep.subr.mxu0 %v255
    %645 = vmatpush1.msra.mxu0 %v254
    %646 = vmatprep.subr.mxu0 %v259
    %647 = vmatpush1.msra.mxu0 %v258
    %648 = vmatprep.subr.mxu0 %v263
    %649 = vmatpush1.msra.mxu0 %v262
    %650 = vmatprep.subr.mxu0 %v267
    %651 = vmatpush1.msra.mxu0 %v266
    %652 = vmatprep.subr.mxu0 %v271
    %653 = vmatpush1.msra.mxu0 %v270
    %654 = vmatprep.subr.mxu0 %v275
    %655 = vmatpush1.msra.mxu0 %v274
    %656 = vmatprep.subr.mxu0 %v279
    %657 = vmatpush1.msra.mxu0 %v278
    %658 = vmatprep.subr.mxu0 %v283
    %659 = vmatpush1.msra.mxu0 %v282
    %660 = vmatprep.subr.mxu0 %v287
    %661 = vmatpush1.msra.mxu0 %v286
    %662 = vmatprep.subr.mxu0 %v291
    %663 = vmatpush1.msra.mxu0 %v290
    %664 = vmatprep.subr.mxu0 %v295
    %665 = vmatpush1.msra.mxu0 %v294
    %666 = vmatprep.subr.mxu0 %v299
    %667 = vmatpush1.msra.mxu0 %v298
    %668 = vmatprep.subr.mxu0 %v303
    %669 = vmatpush1.msra.mxu0 %v302
    %670 = vmatprep.subr.mxu0 %v307
    %671 = vmatpush1.msra.mxu0 %v306
    %672 = vmatprep.subr.mxu0 %v311
    %673 = vmatpush1.msra.mxu0 %v310
    %674 = vmatprep.subr.mxu0 %v315
    %675 = vmatpush1.msra.mxu0 %v314
    %676 = vmatprep.subr.mxu0 %v319
    %677 = vmatpush1.msra.mxu0 %v318
    %678 = vmatprep.subr.mxu0 %v323
    %679 = vmatpush1.msra.mxu0 %v322
    %680 = vmatprep.subr.mxu0 %v327
    %681 = vmatpush1.msra.mxu0 %v326
    %682 = vmatprep.subr.mxu0 %v331
    %683 = vmatpush1.msra.mxu0 %v330
    %684 = vmatprep.subr.mxu0 %v335
    %685 = vmatpush1.msra.mxu0 %v334
    %686 = vmatprep.subr.mxu0 %v339
    %687 = vmatpush1.msra.mxu0 %v338
    %688 = vmatprep.subr.mxu0 %v343
    %689 = vmatpush1.msra.mxu0 %v342
    %690 = vmatprep.subr.mxu0 %v347
    %691 = vmatpush1.msra.mxu0 %v346
    %692 = vmatprep.subr.mxu0 %v351
    %693 = vmatpush1.msra.mxu0 %v350
    %694 = vmatprep.subr.mxu0 %v355
    %695 = vmatpush1.msra.mxu0 %v354
    %696 = vmatprep.subr.mxu0 %v359
    %697 = vmatpush1.msra.mxu0 %v358
    %698 = vmatprep.subr.mxu0 %v363
    %699 = vmatpush1.msra.mxu0 %v362
    %700 = vmatprep.subr.mxu0 %v367
    %701 = vmatpush1.msra.mxu0 %v366
    %702 = vmatprep.mubr.f32.mxu0 %v167
    %703 = vmatmul.mubr.f32.gmra.mrb[0].mxu0 %v165
    %v704 = vpop.f32.mrb[0].mxu0
    %v705 = vadd.f32 0.0, %v704
    %v706 = vpop.f32.mrb[0].mxu0
    %v707 = vadd.f32 0.0, %v706
    %708 = vdwg.mxu0
    %709 = vmatprep.subr.mxu0 %v371
    %710 = vmatpush1.msra.mxu0 %v370
    %711 = vmatprep.subr.mxu0 %v375
    %712 = vmatpush1.msra.mxu0 %v374
    %713 = vmatprep.subr.mxu0 %v379
    %714 = vmatpush1.msra.mxu0 %v378
    %715 = vmatprep.subr.mxu0 %v383
    %716 = vmatpush1.msra.mxu0 %v382
    %717 = vmatprep.subr.mxu0 %v387
    %718 = vmatpush1.msra.mxu0 %v386
    %719 = vmatprep.subr.mxu0 %v391
    %720 = vmatpush1.msra.mxu0 %v390
    %721 = vmatprep.subr.mxu0 %v395
    %722 = vmatpush1.msra.mxu0 %v394
    %723 = vmatprep.subr.mxu0 %v399
    %724 = vmatpush1.msra.mxu0 %v398
    %725 = vmatprep.subr.mxu0 %v403
    %726 = vmatpush1.msra.mxu0 %v402
    %727 = vmatprep.subr.mxu0 %v407
    %728 = vmatpush1.msra.mxu0 %v406
    %729 = vmatprep.subr.mxu0 %v411
    %730 = vmatpush1.msra.mxu0 %v410
    %731 = vmatprep.subr.mxu0 %v415
    %732 = vmatpush1.msra.mxu0 %v414
    %733 = vmatprep.subr.mxu0 %v419
    %734 = vmatpush1.msra.mxu0 %v418
    %735 = vmatprep.subr.mxu0 %v423
    %736 = vmatpush1.msra.mxu0 %v422
    %737 = vmatprep.subr.mxu0 %v427
    %738 = vmatpush1.msra.mxu0 %v426
    %739 = vmatprep.subr.mxu0 %v431
    %740 = vmatpush1.msra.mxu0 %v430
    %741 = vmatprep.subr.mxu0 %v435
    %742 = vmatpush1.msra.mxu0 %v434
    %743 = vmatprep.subr.mxu0 %v439
    %744 = vmatpush1.msra.mxu0 %v438
    %745 = vmatprep.subr.mxu0 %v443
    %746 = vmatpush1.msra.mxu0 %v442
    %747 = vmatprep.subr.mxu0 %v447
    %748 = vmatpush1.msra.mxu0 %v446
    %749 = vmatprep.subr.mxu0 %v451
    %750 = vmatpush1.msra.mxu0 %v450
    %751 = vmatprep.subr.mxu0 %v455
    %752 = vmatpush1.msra.mxu0 %v454
    %753 = vmatprep.subr.mxu0 %v459
    %754 = vmatpush1.msra.mxu0 %v458
    %755 = vmatprep.subr.mxu0 %v463
    %756 = vmatpush1.msra.mxu0 %v462
    %757 = vmatprep.subr.mxu0 %v467
    %758 = vmatpush1.msra.mxu0 %v466
    %759 = vmatprep.subr.mxu0 %v471
    %760 = vmatpush1.msra.mxu0 %v470
    %761 = vmatprep.subr.mxu0 %v475
    %762 = vmatpush1.msra.mxu0 %v474
    %763 = vmatprep.subr.mxu0 %v479
    %764 = vmatpush1.msra.mxu0 %v478
    %765 = vmatprep.subr.mxu0 %v483
    %766 = vmatpush1.msra.mxu0 %v482
    %767 = vmatprep.subr.mxu0 %v487
    %768 = vmatpush1.msra.mxu0 %v486
    %769 = vmatprep.subr.mxu0 %v491
    %770 = vmatpush1.msra.mxu0 %v490
    %771 = vmatprep.subr.mxu0 %v495
    %772 = vmatpush1.msra.mxu0 %v494
    %773 = vmatprep.mubr.f32.mxu0 %v238
    %774 = vmatmul.mubr.f32.gmra.mrb[0].mxu0 %v236
    %v775 = vpop.f32.mrb[0].mxu0
    %v776 = vadd.f32 %v705, %v775
    %v777 = vpop.f32.mrb[0].mxu0
    %v778 = vadd.f32 %v707, %v777
    %779 = vdwg.mxu0
    %v780 = vsub.f32 %v165, %v634
    %v781 = vsub.f32 %v167, %v636
    %v782 = vsub.f32 %v236, %v776
    %v783 = vsub.f32 %v238, %v778
    %v784 = vmul.f32 %v780, %v780
    %v785 = vmul.f32 %v781, %v781
    %v786 = vmul.f32 %v782, %v782
    %v787 = vmul.f32 %v783, %v783
    %788 = vmatprep.subr.mxu0 %v241
    %789 = vmatpush1.msra.mxu0 %v240
    %790 = vmatprep.subr.mxu0 %v245
    %791 = vmatpush1.msra.mxu0 %v244
    %792 = vmatprep.subr.mxu0 %v249
    %793 = vmatpush1.msra.mxu0 %v248
    %794 = vmatprep.subr.mxu0 %v253
    %795 = vmatpush1.msra.mxu0 %v252
    %796 = vmatprep.subr.mxu0 %v257
    %797 = vmatpush1.msra.mxu0 %v256
    %798 = vmatprep.subr.mxu0 %v261
    %799 = vmatpush1.msra.mxu0 %v260
    %800 = vmatprep.subr.mxu0 %v265
    %801 = vmatpush1.msra.mxu0 %v264
    %802 = vmatprep.subr.mxu0 %v269
    %803 = vmatpush1.msra.mxu0 %v268
    %804 = vmatprep.subr.mxu0 %v273
    %805 = vmatpush1.msra.mxu0 %v272
    %806 = vmatprep.subr.mxu0 %v277
    %807 = vmatpush1.msra.mxu0 %v276
    %808 = vmatprep.subr.mxu0 %v281
    %809 = vmatpush1.msra.mxu0 %v280
    %810 = vmatprep.subr.mxu0 %v285
    %811 = vmatpush1.msra.mxu0 %v284
    %812 = vmatprep.subr.mxu0 %v289
    %813 = vmatpush1.msra.mxu0 %v288
    %814 = vmatprep.subr.mxu0 %v293
    %815 = vmatpush1.msra.mxu0 %v292
    %816 = vmatprep.subr.mxu0 %v297
    %817 = vmatpush1.msra.mxu0 %v296
    %818 = vmatprep.subr.mxu0 %v301
    %819 = vmatpush1.msra.mxu0 %v300
    %820 = vmatprep.subr.mxu0 %v305
    %821 = vmatpush1.msra.mxu0 %v304
    %822 = vmatprep.subr.mxu0 %v309
    %823 = vmatpush1.msra.mxu0 %v308
    %824 = vmatprep.subr.mxu0 %v313
    %825 = vmatpush1.msra.mxu0 %v312
    %826 = vmatprep.subr.mxu0 %v317
    %827 = vmatpush1.msra.mxu0 %v316
    %828 = vmatprep.subr.mxu0 %v321
    %829 = vmatpush1.msra.mxu0 %v320
    %830 = vmatprep.subr.mxu0 %v325
    %831 = vmatpush1.msra.mxu0 %v324
    %832 = vmatprep.subr.mxu0 %v329
    %833 = vmatpush1.msra.mxu0 %v328
    %834 = vmatprep.subr.mxu0 %v333
    %835 = vmatpush1.msra.mxu0 %v332
    %836 = vmatprep.subr.mxu0 %v337
    %837 = vmatpush1.msra.mxu0 %v336
    %838 = vmatprep.subr.mxu0 %v341
    %839 = vmatpush1.msra.mxu0 %v340
    %840 = vmatprep.subr.mxu0 %v345
    %841 = vmatpush1.msra.mxu0 %v344
    %842 = vmatprep.subr.mxu0 %v349
    %843 = vmatpush1.msra.mxu0 %v348
    %844 = vmatprep.subr.mxu0 %v353
    %845 = vmatpush1.msra.mxu0 %v352
    %846 = vmatprep.subr.mxu0 %v357
    %847 = vmatpush1.msra.mxu0 %v356
    %848 = vmatprep.subr.mxu0 %v361
    %849 = vmatpush1.msra.mxu0 %v360
    %850 = vmatprep.subr.mxu0 %v365
    %851 = vmatpush1.msra.mxu0 %v364
    %852 = vmatprep.mubr.f32.mxu0 %v785
    %853 = vmatmul.mubr.f32.gmra.mrb[0].mxu0 %v784
    %v854 = vpop.f32.mrb[0].mxu0
    %v855 = vadd.f32 1e-05, %v854
    %v856 = vpop.f32.mrb[0].mxu0
    %v857 = vadd.f32 1e-05, %v856
    %858 = vdwg.mxu0
    %859 = vmatprep.subr.mxu0 %v369
    %860 = vmatpush1.msra.mxu0 %v368
    %861 = vmatprep.subr.mxu0 %v373
    %862 = vmatpush1.msra.mxu0 %v372
    %863 = vmatprep.subr.mxu0 %v377
    %864 = vmatpush1.msra.mxu0 %v376
    %865 = vmatprep.subr.mxu0 %v381
    %866 = vmatpush1.msra.mxu0 %v380
    %867 = vmatprep.subr.mxu0 %v385
    %868 = vmatpush1.msra.mxu0 %v384
    %869 = vmatprep.subr.mxu0 %v389
    %870 = vmatpush1.msra.mxu0 %v388
    %871 = vmatprep.subr.mxu0 %v393
    %872 = vmatpush1.msra.mxu0 %v392
    %873 = vmatprep.subr.mxu0 %v397
    %874 = vmatpush1.msra.mxu0 %v396
    %875 = vmatprep.subr.mxu0 %v401
    %876 = vmatpush1.msra.mxu0 %v400
    %877 = vmatprep.subr.mxu0 %v405
    %878 = vmatpush1.msra.mxu0 %v404
    %879 = vmatprep.subr.mxu0 %v409
    %880 = vmatpush1.msra.mxu0 %v408
    %881 = vmatprep.subr.mxu0 %v413
    %882 = vmatpush1.msra.mxu0 %v412
    %883 = vmatprep.subr.mxu0 %v417
    %884 = vmatpush1.msra.mxu0 %v416
    %885 = vmatprep.subr.mxu0 %v421
    %886 = vmatpush1.msra.mxu0 %v420
    %887 = vmatprep.subr.mxu0 %v425
    %888 = vmatpush1.msra.mxu0 %v424
    %889 = vmatprep.subr.mxu0 %v429
    %890 = vmatpush1.msra.mxu0 %v428
    %891 = vmatprep.subr.mxu0 %v433
    %892 = vmatpush1.msra.mxu0 %v432
    %893 = vmatprep.subr.mxu0 %v437
    %894 = vmatpush1.msra.mxu0 %v436
    %895 = vmatprep.subr.mxu0 %v441
    %896 = vmatpush1.msra.mxu0 %v440
    %897 = vmatprep.subr.mxu0 %v445
    %898 = vmatpush1.msra.mxu0 %v444
    %899 = vmatprep.subr.mxu0 %v449
    %900 = vmatpush1.msra.mxu0 %v448
    %901 = vmatprep.subr.mxu0 %v453
    %902 = vmatpush1.msra.mxu0 %v452
    %903 = vmatprep.subr.mxu0 %v457
    %904 = vmatpush1.msra.mxu0 %v456
    %905 = vmatprep.subr.mxu0 %v461
    %906 = vmatpush1.msra.mxu0 %v460
    %907 = vmatprep.subr.mxu0 %v465
    %908 = vmatpush1.msra.mxu0 %v464
    %909 = vmatprep.subr.mxu0 %v469
    %910 = vmatpush1.msra.mxu0 %v468
    %911 = vmatprep.subr.mxu0 %v473
    %912 = vmatpush1.msra.mxu0 %v472
    %913 = vmatprep.subr.mxu0 %v477
    %914 = vmatpush1.msra.mxu0 %v476
    %915 = vmatprep.subr.mxu0 %v481
    %916 = vmatpush1.msra.mxu0 %v480
    %917 = vmatprep.subr.mxu0 %v485
    %918 = vmatpush1.msra.mxu0 %v484
    %919 = vmatprep.subr.mxu0 %v489
    %920 = vmatpush1.msra.mxu0 %v488
    %921 = vmatprep.subr.mxu0 %v493
    %922 = vmatpush1.msra.mxu0 %v492
    %923 = vmatprep.mubr.f32.mxu0 %v787
    %924 = vmatmul.mubr.f32.gmra.mrb[0].mxu0 %v786
    %v925 = vpop.f32.mrb[0].mxu0
    %v926 = vadd.f32 %v855, %v925
    %v927 = vpop.f32.mrb[0].mxu0
    %v928 = vadd.f32 %v857, %v927
    %929 = vdwg.mxu0
    %930 = vmatprep.subr.mxu0 %v243
    %931 = vmatpush1.msra.mxu0 %v242
    %932 = vmatprep.subr.mxu0 %v247
    %933 = vmatpush1.msra.mxu0 %v246
    %934 = vmatprep.subr.mxu0 %v251
    %935 = vmatpush1.msra.mxu0 %v250
    %936 = vmatprep.subr.mxu0 %v255
    %937 = vmatpush1.msra.mxu0 %v254
    %938 = vmatprep.subr.mxu0 %v259
    %939 = vmatpush1.msra.mxu0 %v258
    %940 = vmatprep.subr.mxu0 %v263
    %941 = vmatpush1.msra.mxu0 %v262
    %942 = vmatprep.subr.mxu0 %v267
    %943 = vmatpush1.msra.mxu0 %v266
    %944 = vmatprep.subr.mxu0 %v271
    %945 = vmatpush1.msra.mxu0 %v270
    %946 = vmatprep.subr.mxu0 %v275
    %947 = vmatpush1.msra.mxu0 %v274
    %948 = vmatprep.subr.mxu0 %v279
    %949 = vmatpush1.msra.mxu0 %v278
    %950 = vmatprep.subr.mxu0 %v283
    %951 = vmatpush1.msra.mxu0 %v282
    %952 = vmatprep.subr.mxu0 %v287
    %953 = vmatpush1.msra.mxu0 %v286
    %954 = vmatprep.subr.mxu0 %v291
    %955 = vmatpush1.msra.mxu0 %v290
    %956 = vmatprep.subr.mxu0 %v295
    %957 = vmatpush1.msra.mxu0 %v294
    %958 = vmatprep.subr.mxu0 %v299
    %959 = vmatpush1.msra.mxu0 %v298
    %960 = vmatprep.subr.mxu0 %v303
    %961 = vmatpush1.msra.mxu0 %v302
    %962 = vmatprep.subr.mxu0 %v307
    %963 = vmatpush1.msra.mxu0 %v306
    %964 = vmatprep.subr.mxu0 %v311
    %965 = vmatpush1.msra.mxu0 %v310
    %966 = vmatprep.subr.mxu0 %v315
    %967 = vmatpush1.msra.mxu0 %v314
    %968 = vmatprep.subr.mxu0 %v319
    %969 = vmatpush1.msra.mxu0 %v318
    %970 = vmatprep.subr.mxu0 %v323
    %971 = vmatpush1.msra.mxu0 %v322
    %972 = vmatprep.subr.mxu0 %v327
    %973 = vmatpush1.msra.mxu0 %v326
    %974 = vmatprep.subr.mxu0 %v331
    %975 = vmatpush1.msra.mxu0 %v330
    %976 = vmatprep.subr.mxu0 %v335
    %977 = vmatpush1.msra.mxu0 %v334
    %978 = vmatprep.subr.mxu0 %v339
    %979 = vmatpush1.msra.mxu0 %v338
    %980 = vmatprep.subr.mxu0 %v343
    %981 = vmatpush1.msra.mxu0 %v342
    %982 = vmatprep.subr.mxu0 %v347
    %983 = vmatpush1.msra.mxu0 %v346
    %984 = vmatprep.subr.mxu0 %v351
    %985 = vmatpush1.msra.mxu0 %v350
    %986 = vmatprep.subr.mxu0 %v355
    %987 = vmatpush1.msra.mxu0 %v354
    %988 = vmatprep.subr.mxu0 %v359
    %989 = vmatpush1.msra.mxu0 %v358
    %990 = vmatprep.subr.mxu0 %v363
    %991 = vmatpush1.msra.mxu0 %v362
    %992 = vmatprep.subr.mxu0 %v367
    %993 = vmatpush1.msra.mxu0 %v366
    %994 = vmatprep.mubr.f32.mxu0 %v785
    %995 = vmatmul.mubr.f32.gmra.mrb[0].mxu0 %v784
    %v996 = vpop.f32.mrb[0].mxu0
    %v997 = vadd.f32 1e-05, %v996
    %v998 = vpop.f32.mrb[0].mxu0
    %v999 = vadd.f32 1e-05, %v998
    %1000 = vdwg.mxu0
    %1001 = vmatprep.subr.mxu0 %v371
    %1002 = vmatpush1.msra.mxu0 %v370
    %1003 = vmatprep.subr.mxu0 %v375
    %1004 = vmatpush1.msra.mxu0 %v374
    %1005 = vmatprep.subr.mxu0 %v379
    %1006 = vmatpush1.msra.mxu0 %v378
    %1007 = vmatprep.subr.mxu0 %v383
    %1008 = vmatpush1.msra.mxu0 %v382
    %1009 = vmatprep.subr.mxu0 %v387
    %1010 = vmatpush1.msra.mxu0 %v386
    %1011 = vmatprep.subr.mxu0 %v391
    %1012 = vmatpush1.msra.mxu0 %v390
    %1013 = vmatprep.subr.mxu0 %v395
    %1014 = vmatpush1.msra.mxu0 %v394
    %1015 = vmatprep.subr.mxu0 %v399
    %1016 = vmatpush1.msra.mxu0 %v398
    %1017 = vmatprep.subr.mxu0 %v403
    %1018 = vmatpush1.msra.mxu0 %v402
    %1019 = vmatprep.subr.mxu0 %v407
    %1020 = vmatpush1.msra.mxu0 %v406
    %1021 = vmatprep.subr.mxu0 %v411
    %1022 = vmatpush1.msra.mxu0 %v410
    %1023 = vmatprep.subr.mxu0 %v415
    %1024 = vmatpush1.msra.mxu0 %v414
    %1025 = vmatprep.subr.mxu0 %v419
    %1026 = vmatpush1.msra.mxu0 %v418
    %1027 = vmatprep.subr.mxu0 %v423
    %1028 = vmatpush1.msra.mxu0 %v422
    %1029 = vmatprep.subr.mxu0 %v427
    %1030 = vmatpush1.msra.mxu0 %v426
    %1031 = vmatprep.subr.mxu0 %v431
    %1032 = vmatpush1.msra.mxu0 %v430
    %1033 = vmatprep.subr.mxu0 %v435
    %1034 = vmatpush1.msra.mxu0 %v434
    %1035 = vmatprep.subr.mxu0 %v439
    %1036 = vmatpush1.msra.mxu0 %v438
    %1037 = vmatprep.subr.mxu0 %v443
    %1038 = vmatpush1.msra.mxu0 %v442
    %1039 = vmatprep.subr.mxu0 %v447
    %1040 = vmatpush1.msra.mxu0 %v446
    %1041 = vmatprep.subr.mxu0 %v451
    %1042 = vmatpush1.msra.mxu0 %v450
    %1043 = vmatprep.subr.mxu0 %v455
    %1044 = vmatpush1.msra.mxu0 %v454
    %1045 = vmatprep.subr.mxu0 %v459
    %1046 = vmatpush1.msra.mxu0 %v458
    %1047 = vmatprep.subr.mxu0 %v463
    %1048 = vmatpush1.msra.mxu0 %v462
    %1049 = vmatprep.subr.mxu0 %v467
    %1050 = vmatpush1.msra.mxu0 %v466
    %1051 = vmatprep.subr.mxu0 %v471
    %1052 = vmatpush1.msra.mxu0 %v470
    %1053 = vmatprep.subr.mxu0 %v475
    %1054 = vmatpush1.msra.mxu0 %v474
    %1055 = vmatprep.subr.mxu0 %v479
    %1056 = vmatpush1.msra.mxu0 %v478
    %1057 = vmatprep.subr.mxu0 %v483
    %1058 = vmatpush1.msra.mxu0 %v482
    %1059 = vmatprep.subr.mxu0 %v487
    %1060 = vmatpush1.msra.mxu0 %v486
    %1061 = vmatprep.subr.mxu0 %v491
    %1062 = vmatpush1.msra.mxu0 %v490
    %1063 = vmatprep.subr.mxu0 %v495
    %1064 = vmatpush1.msra.mxu0 %v494
    %1065 = vmatprep.mubr.f32.mxu0 %v787
    %1066 = vmatmul.mubr.f32.gmra.mrb[0].mxu0 %v786
    %v1067 = vpop.f32.mrb[0].mxu0
    %v1068 = vadd.f32 %v997, %v1067
    %v1069 = vpop.f32.mrb[0].mxu0
    %v1070 = vadd.f32 %v999, %v1069
    %1071 = vdwg.mxu0
    %v1072 = vrsqrt.pop %v926
    %v1073 = vrsqrt.pop %v928
    %v1074 = vrsqrt.pop %v1068
    %v1075 = vrsqrt.pop %v1070
    %v1076 = vmul.f32 %v780, %v1072
    %v1077 = vmul.f32 %v781, %v1073
    %v1078 = vmul.f32 %v782, %v1074
    %v1079 = vmul.f32 %v783, %v1075
    %v1080 = vld [vmem:[%s2] sm:$0xf]
    %v1082 = vlaneseq
    %v1083 = vshrl.u32 %v1082, 7
    %v1084 = vsub.s32 0, %v1083
    %v1085 = vrot.slane %v1080, %v1084
    %v1086 = vlaneseq
    %v1087 = vshrl.u32 %v1086, 7
    %v1088 = vsub.s32 1, %v1087
    %v1089 = vrot.slane %v1080, %v1088
    %v1090 = vlaneseq
    %v1091 = vshrl.u32 %v1090, 7
    %v1092 = vsub.s32 2, %v1091
    %v1093 = vrot.slane %v1080, %v1092
    %v1094 = vlaneseq
    %v1095 = vshrl.u32 %v1094, 7
    %v1096 = vsub.s32 3, %v1095
    %v1097 = vrot.slane %v1080, %v1096
    %v1102 = vmul.f32 %v1076, %v1085
    %v1103 = vmul.f32 %v1077, %v1089
    %v1104 = vmul.f32 %v1078, %v1093
    %v1105 = vmul.f32 %v1079, %v1097
    %v1106 = vld [vmem:[%s3] sm:$0xf]
    %v1108 = vlaneseq
    %v1109 = vshrl.u32 %v1108, 7
    %v1110 = vsub.s32 0, %v1109
    %v1111 = vrot.slane %v1106, %v1110
    %v1112 = vlaneseq
    %v1113 = vshrl.u32 %v1112, 7
    %v1114 = vsub.s32 1, %v1113
    %v1115 = vrot.slane %v1106, %v1114
    %v1116 = vlaneseq
    %v1117 = vshrl.u32 %v1116, 7
    %v1118 = vsub.s32 2, %v1117
    %v1119 = vrot.slane %v1106, %v1118
    %v1120 = vlaneseq
    %v1121 = vshrl.u32 %v1120, 7
    %v1122 = vsub.s32 3, %v1121
    %v1123 = vrot.slane %v1106, %v1122
    %v1128 = vadd.f32 %v1102, %v1111
    %v1129 = vadd.f32 %v1103, %v1115
    %v1130 = vadd.f32 %v1104, %v1119
    %v1131 = vadd.f32 %v1105, %v1123
    %v1132 = vmax.f32 %v1128, 0.0
    %v1133 = vmax.f32 %v1129, 0.0
    %v1134 = vmax.f32 %v1130, 0.0
    %v1135 = vmax.f32 %v1131, 0.0
    %v1140 = vcombine.low %v1132, %v1133
    %v1141 = vcombine.low %v1134, %v1135
    %1144 = vst [vmem:[#allocation8] sm:$0xff] %v1140
    %1145 = vst [vmem:[#allocation8 + $0x8] sm:$0xff] %v1141
    // Predicated region
    $region34: #{tpu_custom_call.1} parent=1 // pred_check
      _
    $region35: #{tpu_custom_call.1} parent=1 // pred_check_branch
      %1147 = sbr.rel (0) target = $region37
    $region36: #{tpu_custom_call.1} parent=1 // pred_region
      %s1149 = ssub.s32 256, 256
      %1150 = vsyncadd [#allocation4], %s1149
      %s1152 = sshll.u32 [#allocation8], 4
      %s1153 = int_to_ptr.vmem [resolvable:$true] %s1152
      %1155 = dma.vmem_to_hbm [thread:$0]  %s1153, 256, %s5, [#allocation4]
    $region37: #{tpu_custom_call.1} parent=1 // pred_fallthru
      _
    // Predicated region
    $region38: #{tpu_custom_call.1} parent=1 // pred_check
      _
    $region39: #{tpu_custom_call.1} parent=1 // pred_check_branch
      %1157 = sbr.rel (0) target = $region41
    $region40: #{tpu_custom_call.1} parent=1 // pred_region
      %1158 = dma.done [#allocation4], 256
    $region41: #{tpu_custom_call.1} parent=1 // pred_fallthru
      _
    %1159 = vsyncpa [#allocation3], 1
    %1160 = vsyncpa [#allocation6], 1
    %1161 = vsyncpa [#allocation4], 1

</llo_original>
